<compile_context>
chip_gen: v5e
topology: v5e:2x2
jax: 0.10.0
libtpu: 0.0.40
codegen_flags: <defaults>
</compile_context>

<pallas_src>
import functools

import jax
import jax.numpy as jnp
from jax import lax
from jax.experimental import pallas as pl
from jax.experimental.pallas import tpu as pltpu

BN_EPS = 1e-5


def _round_up(x, m):
    return (x + m - 1) // m * m


def _sublane_multiple(dtype):
    # f32 -> 8 rows per vreg, bf16 -> 16, int8/fp8 -> 32 (packed sublanes).
    return max(8, 32 // jnp.dtype(dtype).itemsize)


def _vmem_capacity_bytes():
    try:
        return int(pltpu.get_tpu_info().vmem_capacity_bytes)
    except Exception:
        return 64 << 20  # conservative: v7x per-TensorCore VMEM


# ------------------------------- kernels ------------------------------------
def _mlp_kernel_single_k(x_ref, w_ref, p_ref, o_ref):
    """Whole K resident: one MXU matmul + folded BN/bias epilogue, no scratch."""
    acc = jnp.dot(x_ref[...], w_ref[...], preferred_element_type=jnp.float32)
    y = acc * p_ref[0:1, :] + p_ref[1:2, :]          # folded BN(eval) + bias
    # Dropout (eval) = identity; ReLU.
    o_ref[...] = jnp.maximum(y, 0.0).astype(o_ref.dtype)


def _mlp_kernel_multi_k(x_ref, w_ref, p_ref, o_ref, acc_ref):
    """K tiled: f32 VMEM accumulator with pl.when init/finalize."""
    k = pl.program_id(2)

    @pl.when(k == 0)
    def _init():
        acc_ref[...] = jnp.zeros_like(acc_ref)

    acc_ref[...] += jnp.dot(x_ref[...], w_ref[...],
                            preferred_element_type=jnp.float32)

    @pl.when(k == pl.num_programs(2) - 1)
    def _finalize():
        y = acc_ref[...] * p_ref[0:1, :] + p_ref[1:2, :]
        o_ref[...] = jnp.maximum(y, 0.0).astype(o_ref.dtype)


# --------------------------- one-time preparation ----------------------------
def prepare_mlp_params(weight, bias, gamma, beta, running_mean, running_var,
                       *, compute_dtype=jnp.bfloat16, tn=512, tk=2048):
    """One-time (per model, NOT per forward) parameter preparation.

    * Folds BatchNorm1d(eval) + Linear bias into a per-feature scale/shift
      (f32):  out = relu((x @ W^T) * scale + shift)
    * Casts the weight to `compute_dtype`, transposes it to (in, out) so the
      kernel needs no per-tile transpose, and zero-pads to tile multiples.

    Returns (w_t_padded, params_padded, tn, tk).
    """
    out_dim, in_dim = weight.shape
    tn = min(tn, _round_up(out_dim, 128))
    tk = min(tk, _round_up(in_dim, 128))
    in_p = _round_up(in_dim, tk)
    out_p = _round_up(out_dim, tn)

    scale = gamma.astype(jnp.float32) * lax.rsqrt(
        running_var.astype(jnp.float32) + BN_EPS)
    shift = (bias.astype(jnp.float32) - running_mean.astype(jnp.float32)) * scale \
        + beta.astype(jnp.float32)
    params = jnp.stack([scale, shift], axis=0)                # (2, out_dim) f32
    if out_p != out_dim:
        params = jnp.pad(params, ((0, 0), (0, out_p - out_dim)))

    w_t = weight.astype(compute_dtype).T                       # (in, out)
    if (in_p, out_p) != (in_dim, out_dim):
        w_t = jnp.pad(w_t, ((0, in_p - in_dim), (0, out_p - out_dim)))
    return w_t, params, tn, tk


# -------------------------------- forward -----------------------------------
@functools.partial(
    jax.jit,
    static_argnames=("out_dim", "tn", "tk", "tm_max", "compute_dtype"))
def mlp_forward_prepared(x, w_t, params, *, out_dim, tn, tk, tm_max=1024,
                         compute_dtype=jnp.bfloat16):
    """x: (N, in_dim); w_t: (in_p, out_p) pre-transposed/padded weight."""
    n, in_dim = x.shape
    in_p, out_p = w_t.shape
    grid_k = in_p // tk
    grid_n = out_p // tn

    ib = jnp.dtype(compute_dtype).itemsize
    ob = jnp.dtype(x.dtype).itemsize
    sub = _sublane_multiple(compute_dtype)

    vmem_cap = _vmem_capacity_bytes()
    budget = int(0.80 * vmem_cap)

    def footprint(tm_):
        # Double-buffered x / W / params / out tiles (+ single f32 accumulator
        # only when K is actually tiled).
        e = 2 * (tm_ * tk * ib + tk * tn * ib + 2 * tn * 4 + tm_ * tn * ob)
        if grid_k > 1:
            e += tm_ * tn * 4
        return e

    # Keep the whole (padded) batch resident when it fits: the weight is then
    # streamed from HBM exactly once.
    tm = min(tm_max, _round_up(n, sub))
    while footprint(tm) > budget and tm > sub:
        tm = max(sub, _round_up(tm // 2, sub))

    n_p = _round_up(n, tm)
    grid_m = n_p // tm

    x_p = x.astype(compute_dtype)
    if (n_p, in_p) != (n, in_dim):
        x_p = jnp.pad(x_p, ((0, n_p - n), (0, in_p - in_dim)))

    vmem_limit = int(min(budget, max(32 << 20, footprint(tm) + (8 << 20))))

    if grid_k == 1:
        out = pl.pallas_call(
            _mlp_kernel_single_k,
            out_shape=jax.ShapeDtypeStruct((n_p, out_p), x.dtype),
            grid_spec=pltpu.PrefetchScalarGridSpec(
                num_scalar_prefetch=0,
                grid=(grid_m, grid_n),
                in_specs=[
                    pl.BlockSpec((tm, tk), lambda i, j: (i, 0)),   # x tile
                    pl.BlockSpec((tk, tn), lambda i, j: (0, j)),   # W^T tile
                    pl.BlockSpec((2, tn), lambda i, j: (0, j)),    # scale/shift
                ],
                out_specs=pl.BlockSpec((tm, tn), lambda i, j: (i, j)),
            ),
            compiler_params=pltpu.CompilerParams(
                dimension_semantics=("parallel", "parallel"),
                vmem_limit_bytes=vmem_limit,
            ),
        )(x_p, w_t, params)
    else:
        out = pl.pallas_call(
            _mlp_kernel_multi_k,
            out_shape=jax.ShapeDtypeStruct((n_p, out_p), x.dtype),
            grid_spec=pltpu.PrefetchScalarGridSpec(
                num_scalar_prefetch=0,
                grid=(grid_m, grid_n, grid_k),
                in_specs=[
                    pl.BlockSpec((tm, tk), lambda i, j, k: (i, k)),  # x tile
                    pl.BlockSpec((tk, tn), lambda i, j, k: (k, j)),  # W^T tile
                    pl.BlockSpec((2, tn), lambda i, j, k: (0, j)),   # scale/shift
                ],
                out_specs=pl.BlockSpec((tm, tn), lambda i, j, k: (i, j)),
                scratch_shapes=[pltpu.VMEM((tm, tn), jnp.float32)],
            ),
            compiler_params=pltpu.CompilerParams(
                dimension_semantics=("parallel", "parallel", "arbitrary"),
                vmem_limit_bytes=vmem_limit,
            ),
        )(x_p, w_t, params)

    return out[:n, :out_dim]


def mlp_forward(x, weight, bias, gamma, beta, running_mean, running_var, *,
                compute_dtype=jnp.bfloat16, tn=512, tk=2048, tm_max=1024):
    """Convenience wrapper (prep + forward). For repeated inference, call
    prepare_mlp_params once and reuse its outputs with mlp_forward_prepared."""
    w_t, params, tn_, tk_ = prepare_mlp_params(
        weight, bias, gamma, beta, running_mean, running_var,
        compute_dtype=compute_dtype, tn=tn, tk=tk)
    return mlp_forward_prepared(
        x, w_t, params, out_dim=weight.shape[0], tn=tn_, tk=tk_,
        tm_max=tm_max, compute_dtype=compute_dtype)


# --------------------------------- test --------------------------------------
def _reference(x, weight, bias, gamma, beta, running_mean, running_var):
    y = jnp.dot(x, weight.T, precision=lax.Precision.HIGHEST) + bias
    y = (y - running_mean) * lax.rsqrt(running_var + BN_EPS) * gamma + beta
    return jnp.maximum(y, 0.0)


if __name__ == "__main__":
    key = jax.random.PRNGKey(0)
    # Small shapes; in/out dims deliberately NOT multiples of 128 to exercise
    # the padding path.
    batch, in_dim, out_dim = 64, 160, 192

    kx, kw, kb, kg, kbe, km, kv = jax.random.split(key, 7)
    x = jax.random.normal(kx, (batch, in_dim), dtype=jnp.float32)

    bound = 1.0 / (in_dim ** 0.5)
    weight = jax.random.uniform(kw, (out_dim, in_dim), jnp.float32, -bound, bound)
    bias = jax.random.uniform(kb, (out_dim,), jnp.float32, -bound, bound)
    gamma = jax.random.uniform(kg, (out_dim,), jnp.float32, 0.5, 1.5)
    beta = 0.1 * jax.random.normal(kbe, (out_dim,), jnp.float32)
    running_mean = 0.1 * jax.random.normal(km, (out_dim,), jnp.float32)
    running_var = jax.random.uniform(kv, (out_dim,), jnp.float32, 0.5, 2.0)

    ref = _reference(x, weight, bias, gamma, beta, running_mean, running_var)

    # 1) Default (bf16 compute, single-K fast path).
    out_bf16 = jax.block_until_ready(
        mlp_forward(x, weight, bias, gamma, beta, running_mean, running_var))
    assert out_bf16.shape == (batch, out_dim)
    assert jnp.allclose(out_bf16, ref, atol=3e-2, rtol=3e-2), float(
        jnp.max(jnp.abs(out_bf16 - ref)))

    # 2) f32 compute, single-K fast path.
    out_f32 = jax.block_until_ready(
        mlp_forward(x, weight, bias, gamma, beta, running_mean, running_var,
                    compute_dtype=jnp.float32))
    assert jnp.allclose(out_f32, ref, atol=5e-3, rtol=5e-3), float(
        jnp.max(jnp.abs(out_f32 - ref)))

    # 3) f32 compute with a forced small tk so the K-tiled accumulator kernel
    #    (multi-K path) is exercised as well.
    out_mk = jax.block_until_ready(
        mlp_forward(x, weight, bias, gamma, beta, running_mean, running_var,
                    compute_dtype=jnp.float32, tk=128))
    assert jnp.allclose(out_mk, ref, atol=5e-3, rtol=5e-3), float(
        jnp.max(jnp.abs(out_mk - ref)))

    print("KERNEL_OK")
</pallas_src>

<mosaic_0001>
module attributes {stable_mosaic.version = 11 : i64} {
  func.func @_mlp_kernel_single_k(%arg0: i32, %arg1: i32, %arg2: memref<64x256xbf16, #tpu.memory_space<vmem>>, %arg3: memref<256x256xbf16, #tpu.memory_space<vmem>>, %arg4: memref<2x256xf32, #tpu.memory_space<vmem>>, %arg5: memref<64x256xf32, #tpu.memory_space<vmem>>) attributes {dimension_semantics = [#tpu.dimension_semantics<parallel>, #tpu.dimension_semantics<parallel>], iteration_bounds = array<i64: 1, 1>, scalar_prefetch = 0 : i64, scratch_operands = 0 : i64, tpu.core_type = #tpu.core_type<tc>, window_params = [{transform_indices = @transform_0, window_bounds = array<i64: 64, 256>}, {transform_indices = @transform_1, window_bounds = array<i64: 256, 256>}, {transform_indices = @transform_2, window_bounds = array<i64: 2, 256>}, {transform_indices = @transform_3, window_bounds = array<i64: 64, 256>}]} {
    %c0 = arith.constant 0 : index
    %c0_0 = arith.constant 0 : index
    %0 = vector.load %arg2[%c0, %c0_0] : memref<64x256xbf16, #tpu.memory_space<vmem>>, vector<64x256xbf16>
    %c0_1 = arith.constant 0 : index
    %c0_2 = arith.constant 0 : index
    %1 = vector.load %arg3[%c0_1, %c0_2] : memref<256x256xbf16, #tpu.memory_space<vmem>>, vector<256x256xbf16>
    %cst = arith.constant dense<0.000000e+00> : vector<64x256xf32>
    %2 = tpu.matmul %0, %1, %cst {dimension_numbers = #tpu.dot_dimension_numbers<[1], [0], [0], [1], [0, 0, 1, 1], [], []>} : vector<64x256xbf16>, vector<256x256xbf16>, vector<64x256xf32> -> vector<64x256xf32>
    %c0_3 = arith.constant 0 : index
    %c0_4 = arith.constant 0 : index
    %3 = vector.load %arg4[%c0_3, %c0_4] : memref<2x256xf32, #tpu.memory_space<vmem>>, vector<1x256xf32>
    %4 = vector.broadcast %3 : vector<1x256xf32> to vector<64x256xf32>
    %5 = arith.mulf %2, %4 : vector<64x256xf32>
    %c1 = arith.constant 1 : index
    %c0_5 = arith.constant 0 : index
    %6 = vector.load %arg4[%c1, %c0_5] : memref<2x256xf32, #tpu.memory_space<vmem>>, vector<1x256xf32>
    %7 = vector.broadcast %6 : vector<1x256xf32> to vector<64x256xf32>
    %8 = arith.addf %5, %7 : vector<64x256xf32>
    %cst_6 = arith.constant 0.000000e+00 : f32
    %9 = vector.broadcast %cst_6 : f32 to vector<64x256xf32>
    %10 = arith.maximumf %8, %9 : vector<64x256xf32>
    %c0_7 = arith.constant 0 : index
    %c0_8 = arith.constant 0 : index
    %11 = vector.load %arg5[%c0_7, %c0_8] : memref<64x256xf32, #tpu.memory_space<vmem>>, vector<64x256xf32>
    tpu.vector_store %arg5[%c0_7, %c0_8], %10 {strides = array<i32>} : memref<64x256xf32, #tpu.memory_space<vmem>>, vector<64x256xf32>,
    return
  }
  func.func @transform_0(%arg0: i32, %arg1: i32) -> (i32, i32) {
    %c0_i32 = arith.constant 0 : i32
    %c0_i32_0 = arith.constant 0 : i32
    return %arg0, %c0_i32 : i32, i32
  }
  func.func @transform_1(%arg0: i32, %arg1: i32) -> (i32, i32) {
    %c0_i32 = arith.constant 0 : i32
    %c0_i32_0 = arith.constant 0 : i32
    return %c0_i32, %arg1 : i32, i32
  }
  func.func @transform_2(%arg0: i32, %arg1: i32) -> (i32, i32) {
    %c0_i32 = arith.constant 0 : i32
    %c0_i32_0 = arith.constant 0 : i32
    return %c0_i32, %arg1 : i32, i32
  }
  func.func @transform_3(%arg0: i32, %arg1: i32) -> (i32, i32) {
    %c0_i32 = arith.constant 0 : i32
    return %arg0, %arg1 : i32, i32
  }
}

</mosaic_0001>

<llo_original>
// kernel: mlp_forward_prepared.1
$region0: #{mlp_forward_prepared.1}
  #allocation0 [shape = 'u32[]', space=smem, size = 0x4, offset = 0x4, fixed_abs, tag = 'smem constant byte address 0x4 - core index']
  #allocation1 [shape = 'u32[72,128]{1,0:T(1,128)}', space=vmem, size = 0x9000, scoped, tag = 'internal scratch']
  %s0 = inlined_call_operand.vmem [shape: bf16[64,256], index: 0, kind: input, shape index: {}]
  %s1 = inlined_call_operand.vmem [shape: bf16[256,256], index: 1, kind: input, shape index: {}]
  %s2 = inlined_call_operand.vmem [shape: f32[2,256], index: 2, kind: input, shape index: {}]
  %s3 = inlined_call_operand.hbm [shape: f32[64,256], index: 3, kind: output, shape index: {}]
  %s4 = sld [smem:[#allocation0]]
  $region22: #{mlp_forward_prepared.1} parent=0
    _
  %s6 = ssub.s32 1, %s4
  %s7 = scalar_select 0, %s6, %s4
  $region1: #{mlp_forward_prepared.1} parent=0
    #allocation2 [shape = 'u8[65536]{0}', space=vmem, size = 0x10000, scoped, tag = 'output window, operand 0, single buffered']
    #allocation3 [shape = 's32[1]{0}', space=sflag, size = 0x4, scoped, tag = 'scoped memory for mlp_forward_prepared.1']
    %8 = vsyncpa [#allocation3], 0
    // Predicated region
    $region2: #{mlp_forward_prepared.1} parent=1 // pred_check
      _
    $region3: #{mlp_forward_prepared.1} parent=1 // pred_check_branch
      %10 = sbr.rel (0) target = $region5
    $region4: #{mlp_forward_prepared.1} parent=1 // pred_region
      _
    $region5: #{mlp_forward_prepared.1} parent=1 // pred_fallthru
      _
    // Predicated region
    $region6: #{mlp_forward_prepared.1} parent=1 // pred_check
      _
    $region7: #{mlp_forward_prepared.1} parent=1 // pred_check_branch
      %12 = sbr.rel (0) target = $region9
    $region8: #{mlp_forward_prepared.1} parent=1 // pred_region
      _
    $region9: #{mlp_forward_prepared.1} parent=1 // pred_fallthru
      _
    // Predicated region
    $region10: #{mlp_forward_prepared.1} parent=1 // pred_check
      _
    $region11: #{mlp_forward_prepared.1} parent=1 // pred_check_branch
      %14 = sbr.rel (0) target = $region13
    $region12: #{mlp_forward_prepared.1} parent=1 // pred_region
      _
    $region13: #{mlp_forward_prepared.1} parent=1 // pred_fallthru
      _
    %v15 = vld [vmem:[%s0] sm:$0xff]
    %v16 = vld [vmem:[%s0 + $0x8] sm:$0xff]
    %v17 = vld [vmem:[%s0 + $0x10] sm:$0xff]
    %v18 = vld [vmem:[%s0 + $0x18] sm:$0xff]
    %v19 = vld [vmem:[%s0 + $0x20] sm:$0xff]
    %v20 = vld [vmem:[%s0 + $0x28] sm:$0xff]
    %v21 = vld [vmem:[%s0 + $0x30] sm:$0xff]
    %v22 = vld [vmem:[%s0 + $0x38] sm:$0xff]
    %v23 = vld [vmem:[%s1] sm:$0xff]
    %v24 = vld [vmem:[%s1 + $0x8] sm:$0xff]
    %v25 = vld [vmem:[%s1 + $0x10] sm:$0xff]
    %v26 = vld [vmem:[%s1 + $0x18] sm:$0xff]
    %v27 = vld [vmem:[%s1 + $0x20] sm:$0xff]
    %v28 = vld [vmem:[%s1 + $0x28] sm:$0xff]
    %v29 = vld [vmem:[%s1 + $0x30] sm:$0xff]
    %v30 = vld [vmem:[%s1 + $0x38] sm:$0xff]
    %v31 = vld [vmem:[%s1 + $0x40] sm:$0xff]
    %v32 = vld [vmem:[%s1 + $0x48] sm:$0xff]
    %v33 = vld [vmem:[%s1 + $0x50] sm:$0xff]
    %v34 = vld [vmem:[%s1 + $0x58] sm:$0xff]
    %v35 = vld [vmem:[%s1 + $0x60] sm:$0xff]
    %v36 = vld [vmem:[%s1 + $0x68] sm:$0xff]
    %v37 = vld [vmem:[%s1 + $0x70] sm:$0xff]
    %v38 = vld [vmem:[%s1 + $0x78] sm:$0xff]
    %v39 = vld [vmem:[%s1 + $0x80] sm:$0xff]
    %v40 = vld [vmem:[%s1 + $0x88] sm:$0xff]
    %v41 = vld [vmem:[%s1 + $0x90] sm:$0xff]
    %v42 = vld [vmem:[%s1 + $0x98] sm:$0xff]
    %v43 = vld [vmem:[%s1 + $0xa0] sm:$0xff]
    %v44 = vld [vmem:[%s1 + $0xa8] sm:$0xff]
    %v45 = vld [vmem:[%s1 + $0xb0] sm:$0xff]
    %v46 = vld [vmem:[%s1 + $0xb8] sm:$0xff]
    %v47 = vld [vmem:[%s1 + $0xc0] sm:$0xff]
    %v48 = vld [vmem:[%s1 + $0xc8] sm:$0xff]
    %v49 = vld [vmem:[%s1 + $0xd0] sm:$0xff]
    %v50 = vld [vmem:[%s1 + $0xd8] sm:$0xff]
    %v51 = vld [vmem:[%s1 + $0xe0] sm:$0xff]
    %v52 = vld [vmem:[%s1 + $0xe8] sm:$0xff]
    %v53 = vld [vmem:[%s1 + $0xf0] sm:$0xff]
    %v54 = vld [vmem:[%s1 + $0xf8] sm:$0xff]
    %v63 = vunpack.c.l.b16 %v15
    %v64 = vunpack.c.h.b16 %v15
    %v65 = vunpack.c.l.b16 %v16
    %v66 = vunpack.c.h.b16 %v16
    %v67 = vunpack.c.l.b16 %v17
    %v68 = vunpack.c.h.b16 %v17
    %v69 = vunpack.c.l.b16 %v18
    %v70 = vunpack.c.h.b16 %v18
    %v71 = vunpack.c.l.b16 %v19
    %v72 = vunpack.c.h.b16 %v19
    %v73 = vunpack.c.l.b16 %v20
    %v74 = vunpack.c.h.b16 %v20
    %v75 = vunpack.c.l.b16 %v21
    %v76 = vunpack.c.h.b16 %v21
    %v77 = vunpack.c.l.b16 %v22
    %v78 = vunpack.c.h.b16 %v22
    %v79 = vpack.c.b16 %v65, %v63
    %v80 = vpack.c.b16 %v66, %v64
    %v81 = vpack.c.b16 %v69, %v67
    %v82 = vpack.c.b16 %v70, %v68
    %v83 = vpack.c.b16 %v73, %v71
    %v84 = vpack.c.b16 %v74, %v72
    %v85 = vpack.c.b16 %v77, %v75
    %v86 = vpack.c.b16 %v78, %v76
    %v127 = vunpack.c.l.b16 %v23
    %v128 = vunpack.c.h.b16 %v23
    %v129 = vunpack.c.l.b16 %v24
    %v130 = vunpack.c.h.b16 %v24
    %v131 = vunpack.c.l.b16 %v25
    %v132 = vunpack.c.h.b16 %v25
    %v133 = vunpack.c.l.b16 %v26
    %v134 = vunpack.c.h.b16 %v26
    %v135 = vunpack.c.l.b16 %v27
    %v136 = vunpack.c.h.b16 %v27
    %v137 = vunpack.c.l.b16 %v28
    %v138 = vunpack.c.h.b16 %v28
    %v139 = vunpack.c.l.b16 %v29
    %v140 = vunpack.c.h.b16 %v29
    %v141 = vunpack.c.l.b16 %v30
    %v142 = vunpack.c.h.b16 %v30
    %v143 = vunpack.c.l.b16 %v31
    %v144 = vunpack.c.h.b16 %v31
    %v145 = vunpack.c.l.b16 %v32
    %v146 = vunpack.c.h.b16 %v32
    %v147 = vunpack.c.l.b16 %v33
    %v148 = vunpack.c.h.b16 %v33
    %v149 = vunpack.c.l.b16 %v34
    %v150 = vunpack.c.h.b16 %v34
    %v151 = vunpack.c.l.b16 %v35
    %v152 = vunpack.c.h.b16 %v35
    %v153 = vunpack.c.l.b16 %v36
    %v154 = vunpack.c.h.b16 %v36
    %v155 = vunpack.c.l.b16 %v37
    %v156 = vunpack.c.h.b16 %v37
    %v157 = vunpack.c.l.b16 %v38
    %v158 = vunpack.c.h.b16 %v38
    %v159 = vunpack.c.l.b16 %v39
    %v160 = vunpack.c.h.b16 %v39
    %v161 = vunpack.c.l.b16 %v40
    %v162 = vunpack.c.h.b16 %v40
    %v163 = vunpack.c.l.b16 %v41
    %v164 = vunpack.c.h.b16 %v41
    %v165 = vunpack.c.l.b16 %v42
    %v166 = vunpack.c.h.b16 %v42
    %v167 = vunpack.c.l.b16 %v43
    %v168 = vunpack.c.h.b16 %v43
    %v169 = vunpack.c.l.b16 %v44
    %v170 = vunpack.c.h.b16 %v44
    %v171 = vunpack.c.l.b16 %v45
    %v172 = vunpack.c.h.b16 %v45
    %v173 = vunpack.c.l.b16 %v46
    %v174 = vunpack.c.h.b16 %v46
    %v175 = vunpack.c.l.b16 %v47
    %v176 = vunpack.c.h.b16 %v47
    %v177 = vunpack.c.l.b16 %v48
    %v178 = vunpack.c.h.b16 %v48
    %v179 = vunpack.c.l.b16 %v49
    %v180 = vunpack.c.h.b16 %v49
    %v181 = vunpack.c.l.b16 %v50
    %v182 = vunpack.c.h.b16 %v50
    %v183 = vunpack.c.l.b16 %v51
    %v184 = vunpack.c.h.b16 %v51
    %v185 = vunpack.c.l.b16 %v52
    %v186 = vunpack.c.h.b16 %v52
    %v187 = vunpack.c.l.b16 %v53
    %v188 = vunpack.c.h.b16 %v53
    %v189 = vunpack.c.l.b16 %v54
    %v190 = vunpack.c.h.b16 %v54
    %v191 = vpack.c.b16 %v129, %v127
    %v192 = vpack.c.b16 %v130, %v128
    %v193 = vpack.c.b16 %v133, %v131
    %v194 = vpack.c.b16 %v134, %v132
    %v195 = vpack.c.b16 %v137, %v135
    %v196 = vpack.c.b16 %v138, %v136
    %v197 = vpack.c.b16 %v141, %v139
    %v198 = vpack.c.b16 %v142, %v140
    %v199 = vpack.c.b16 %v145, %v143
    %v200 = vpack.c.b16 %v146, %v144
    %v201 = vpack.c.b16 %v149, %v147
    %v202 = vpack.c.b16 %v150, %v148
    %v203 = vpack.c.b16 %v153, %v151
    %v204 = vpack.c.b16 %v154, %v152
    %v205 = vpack.c.b16 %v157, %v155
    %v206 = vpack.c.b16 %v158, %v156
    %v207 = vpack.c.b16 %v161, %v159
    %v208 = vpack.c.b16 %v162, %v160
    %v209 = vpack.c.b16 %v165, %v163
    %v210 = vpack.c.b16 %v166, %v164
    %v211 = vpack.c.b16 %v169, %v167
    %v212 = vpack.c.b16 %v170, %v168
    %v213 = vpack.c.b16 %v173, %v171
    %v214 = vpack.c.b16 %v174, %v172
    %v215 = vpack.c.b16 %v177, %v175
    %v216 = vpack.c.b16 %v178, %v176
    %v217 = vpack.c.b16 %v181, %v179
    %v218 = vpack.c.b16 %v182, %v180
    %v219 = vpack.c.b16 %v185, %v183
    %v220 = vpack.c.b16 %v186, %v184
    %v221 = vpack.c.b16 %v189, %v187
    %v222 = vpack.c.b16 %v190, %v188
    %255 = vmatpush.bf16.msra.mxu0 %v205
    %256 = vmatpush.bf16.msra.mxu0 %v203
    %257 = vmatpush.bf16.msra.mxu0 %v201
    %258 = vmatpush.bf16.msra.mxu0 %v199
    %259 = vmatpush.bf16.msra.mxu0 %v197
    %260 = vmatpush.bf16.msra.mxu0 %v195
    %261 = vmatpush.bf16.msra.mxu0 %v193
    %262 = vmatpush.bf16.msra.mxu0 %v191
    %263 = vmatmul.bf16.gmra.mxu0 %v79
    %v264 = vpop.f32.mrf.mxu0
    %v265 = vadd.f32 0.0, %v264
    %v266 = vpop.f32.mrf.mxu0
    %v267 = vadd.f32 0.0, %v266
    %268 = vmatmul.bf16.gmra.mxu0 %v81
    %v269 = vpop.f32.mrf.mxu0
    %v270 = vadd.f32 0.0, %v269
    %v271 = vpop.f32.mrf.mxu0
    %v272 = vadd.f32 0.0, %v271
    %273 = vmatmul.bf16.gmra.mxu0 %v83
    %v274 = vpop.f32.mrf.mxu0
    %v275 = vadd.f32 0.0, %v274
    %v276 = vpop.f32.mrf.mxu0
    %v277 = vadd.f32 0.0, %v276
    %278 = vmatmul.bf16.gmra.mxu0 %v85
    %v279 = vpop.f32.mrf.mxu0
    %v280 = vadd.f32 0.0, %v279
    %v281 = vpop.f32.mrf.mxu0
    %v282 = vadd.f32 0.0, %v281
    %283 = vdwg.mxu0
    %284 = vmatpush.bf16.msra.mxu0 %v221
    %285 = vmatpush.bf16.msra.mxu0 %v219
    %286 = vmatpush.bf16.msra.mxu0 %v217
    %287 = vmatpush.bf16.msra.mxu0 %v215
    %288 = vmatpush.bf16.msra.mxu0 %v213
    %289 = vmatpush.bf16.msra.mxu0 %v211
    %290 = vmatpush.bf16.msra.mxu0 %v209
    %291 = vmatpush.bf16.msra.mxu0 %v207
    %292 = vmatmul.bf16.gmra.mxu0 %v80
    %v293 = vpop.f32.mrf.mxu0
    %v294 = vadd.f32 %v265, %v293
    %v295 = vpop.f32.mrf.mxu0
    %v296 = vadd.f32 %v267, %v295
    %297 = vmatmul.bf16.gmra.mxu0 %v82
    %v298 = vpop.f32.mrf.mxu0
    %v299 = vadd.f32 %v270, %v298
    %v300 = vpop.f32.mrf.mxu0
    %v301 = vadd.f32 %v272, %v300
    %302 = vmatmul.bf16.gmra.mxu0 %v84
    %v303 = vpop.f32.mrf.mxu0
    %v304 = vadd.f32 %v275, %v303
    %v305 = vpop.f32.mrf.mxu0
    %v306 = vadd.f32 %v277, %v305
    %307 = vmatmul.bf16.gmra.mxu0 %v86
    %v308 = vpop.f32.mrf.mxu0
    %v309 = vadd.f32 %v280, %v308
    %v310 = vpop.f32.mrf.mxu0
    %v311 = vadd.f32 %v282, %v310
    %312 = vdwg.mxu0
    %313 = vmatpush.bf16.msra.mxu0 %v206
    %314 = vmatpush.bf16.msra.mxu0 %v204
    %315 = vmatpush.bf16.msra.mxu0 %v202
    %316 = vmatpush.bf16.msra.mxu0 %v200
    %317 = vmatpush.bf16.msra.mxu0 %v198
    %318 = vmatpush.bf16.msra.mxu0 %v196
    %319 = vmatpush.bf16.msra.mxu0 %v194
    %320 = vmatpush.bf16.msra.mxu0 %v192
    %321 = vmatmul.bf16.gmra.mxu0 %v79
    %v322 = vpop.f32.mrf.mxu0
    %v323 = vadd.f32 0.0, %v322
    %v324 = vpop.f32.mrf.mxu0
    %v325 = vadd.f32 0.0, %v324
    %326 = vmatmul.bf16.gmra.mxu0 %v81
    %v327 = vpop.f32.mrf.mxu0
    %v328 = vadd.f32 0.0, %v327
    %v329 = vpop.f32.mrf.mxu0
    %v330 = vadd.f32 0.0, %v329
    %331 = vmatmul.bf16.gmra.mxu0 %v83
    %v332 = vpop.f32.mrf.mxu0
    %v333 = vadd.f32 0.0, %v332
    %v334 = vpop.f32.mrf.mxu0
    %v335 = vadd.f32 0.0, %v334
    %336 = vmatmul.bf16.gmra.mxu0 %v85
    %v337 = vpop.f32.mrf.mxu0
    %v338 = vadd.f32 0.0, %v337
    %v339 = vpop.f32.mrf.mxu0
    %v340 = vadd.f32 0.0, %v339
    %341 = vdwg.mxu0
    %342 = vmatpush.bf16.msra.mxu0 %v222
    %343 = vmatpush.bf16.msra.mxu0 %v220
    %344 = vmatpush.bf16.msra.mxu0 %v218
    %345 = vmatpush.bf16.msra.mxu0 %v216
    %346 = vmatpush.bf16.msra.mxu0 %v214
    %347 = vmatpush.bf16.msra.mxu0 %v212
    %348 = vmatpush.bf16.msra.mxu0 %v210
    %349 = vmatpush.bf16.msra.mxu0 %v208
    %350 = vmatmul.bf16.gmra.mxu0 %v80
    %v351 = vpop.f32.mrf.mxu0
    %v352 = vadd.f32 %v323, %v351
    %v353 = vpop.f32.mrf.mxu0
    %v354 = vadd.f32 %v325, %v353
    %355 = vmatmul.bf16.gmra.mxu0 %v82
    %v356 = vpop.f32.mrf.mxu0
    %v357 = vadd.f32 %v328, %v356
    %v358 = vpop.f32.mrf.mxu0
    %v359 = vadd.f32 %v330, %v358
    %360 = vmatmul.bf16.gmra.mxu0 %v84
    %v361 = vpop.f32.mrf.mxu0
    %v362 = vadd.f32 %v333, %v361
    %v363 = vpop.f32.mrf.mxu0
    %v364 = vadd.f32 %v335, %v363
    %365 = vmatmul.bf16.gmra.mxu0 %v86
    %v366 = vpop.f32.mrf.mxu0
    %v367 = vadd.f32 %v338, %v366
    %v368 = vpop.f32.mrf.mxu0
    %v369 = vadd.f32 %v340, %v368
    %370 = vdwg.mxu0
    %v371 = vld [vmem:[%s2] ss:$2 sm:$0x3]
    %v373 = vperm.slane %v371, 0
    %v374 = vperm.slane %v371, 1
    %v377 = vmul.f32 %v294, %v373
    %v378 = vmul.f32 %v352, %v374
    %v379 = vmul.f32 %v296, %v373
    %v380 = vmul.f32 %v354, %v374
    %v381 = vmul.f32 %v299, %v373
    %v382 = vmul.f32 %v357, %v374
    %v383 = vmul.f32 %v301, %v373
    %v384 = vmul.f32 %v359, %v374
    %v385 = vmul.f32 %v304, %v373
    %v386 = vmul.f32 %v362, %v374
    %v387 = vmul.f32 %v306, %v373
    %v388 = vmul.f32 %v364, %v374
    %v389 = vmul.f32 %v309, %v373
    %v390 = vmul.f32 %v367, %v374
    %v391 = vmul.f32 %v311, %v373
    %v392 = vmul.f32 %v369, %v374
    %s393 = scalar_lea.vmem %s2, 1
    %v394 = vld [vmem:[%s393] ss:$2 sm:$0x3]
    %v396 = vperm.slane %v394, 0
    %v397 = vperm.slane %v394, 1
    %v400 = vadd.f32 %v377, %v396
    %v401 = vadd.f32 %v378, %v397
    %v402 = vadd.f32 %v379, %v396
    %v403 = vadd.f32 %v380, %v397
    %v404 = vadd.f32 %v381, %v396
    %v405 = vadd.f32 %v382, %v397
    %v406 = vadd.f32 %v383, %v396
    %v407 = vadd.f32 %v384, %v397
    %v408 = vadd.f32 %v385, %v396
    %v409 = vadd.f32 %v386, %v397
    %v410 = vadd.f32 %v387, %v396
    %v411 = vadd.f32 %v388, %v397
    %v412 = vadd.f32 %v389, %v396
    %v413 = vadd.f32 %v390, %v397
    %v414 = vadd.f32 %v391, %v396
    %v415 = vadd.f32 %v392, %v397
    %v416 = vmax.f32 %v400, 0.0
    %v417 = vmax.f32 %v401, 0.0
    %v418 = vmax.f32 %v402, 0.0
    %v419 = vmax.f32 %v403, 0.0
    %v420 = vmax.f32 %v404, 0.0
    %v421 = vmax.f32 %v405, 0.0
    %v422 = vmax.f32 %v406, 0.0
    %v423 = vmax.f32 %v407, 0.0
    %v424 = vmax.f32 %v408, 0.0
    %v425 = vmax.f32 %v409, 0.0
    %v426 = vmax.f32 %v410, 0.0
    %v427 = vmax.f32 %v411, 0.0
    %v428 = vmax.f32 %v412, 0.0
    %v429 = vmax.f32 %v413, 0.0
    %v430 = vmax.f32 %v414, 0.0
    %v431 = vmax.f32 %v415, 0.0
    %432 = vst [vmem:[#allocation2] sm:$0xff] %v416
    %433 = vst [vmem:[#allocation2 + $0x8] sm:$0xff] %v417
    %434 = vst [vmem:[#allocation2 + $0x10] sm:$0xff] %v418
    %435 = vst [vmem:[#allocation2 + $0x18] sm:$0xff] %v419
    %436 = vst [vmem:[#allocation2 + $0x20] sm:$0xff] %v420
    %437 = vst [vmem:[#allocation2 + $0x28] sm:$0xff] %v421
    %438 = vst [vmem:[#allocation2 + $0x30] sm:$0xff] %v422
    %439 = vst [vmem:[#allocation2 + $0x38] sm:$0xff] %v423
    %440 = vst [vmem:[#allocation2 + $0x40] sm:$0xff] %v424
    %441 = vst [vmem:[#allocation2 + $0x48] sm:$0xff] %v425
    %442 = vst [vmem:[#allocation2 + $0x50] sm:$0xff] %v426
    %443 = vst [vmem:[#allocation2 + $0x58] sm:$0xff] %v427
    %444 = vst [vmem:[#allocation2 + $0x60] sm:$0xff] %v428
    %445 = vst [vmem:[#allocation2 + $0x68] sm:$0xff] %v429
    %446 = vst [vmem:[#allocation2 + $0x70] sm:$0xff] %v430
    %447 = vst [vmem:[#allocation2 + $0x78] sm:$0xff] %v431
    // Predicated region
    $region14: #{mlp_forward_prepared.1} parent=1 // pred_check
      _
    $region15: #{mlp_forward_prepared.1} parent=1 // pred_check_branch
      %449 = sbr.rel (0) target = $region17
    $region16: #{mlp_forward_prepared.1} parent=1 // pred_region
      %451 = vsyncadd [#allocation3], 0
      %s452 = sshll.u32 [#allocation2], 4
      %s453 = int_to_ptr.vmem [resolvable:$true] %s452
      %s454 = sshll.u32 %s3, 4
      %s455 = int_to_ptr.hbm [resolvable:$true] %s454
      %460 = dma.vmem_to_hbm [thread:$0]  %s453, 2048, %s455, [#allocation3], 256, 256, 16
    $region17: #{mlp_forward_prepared.1} parent=1 // pred_fallthru
      _
    // Predicated region
    $region18: #{mlp_forward_prepared.1} parent=1 // pred_check
      _
    $region19: #{mlp_forward_prepared.1} parent=1 // pred_check_branch
      %462 = sbr.rel (0) target = $region21
    $region20: #{mlp_forward_prepared.1} parent=1 // pred_region
      %464 = dma.done [#allocation3], 2048
    $region21: #{mlp_forward_prepared.1} parent=1 // pred_fallthru
      _
    %465 = vsyncpa [#allocation3], 1

</llo_original>
